<compile_context>
chip_gen: v6e
topology: v6e:2x2x1
jax: 0.10.0
libtpu: 0.0.40
codegen_flags: <defaults>
</compile_context>

<pallas_src>
import functools

import jax
import jax.numpy as jnp
from jax.experimental import pallas as pl
from jax.experimental.pallas import tpu as pltpu


def _round_up(v, m):
    return ((v + m - 1) // m) * m


def _cdiv(a, b):
    return (a + b - 1) // b


def mlp_kernel(x_ref, w1_ref, b1_ref, w2_ref, b2_ref, o_ref):
    # hidden = relu(x @ W1 + b1)  -- all f32 (exact module semantics).
    h = jnp.dot(x_ref[...], w1_ref[...], preferred_element_type=jnp.float32)
    h = jnp.maximum(h + b1_ref[...], 0.0)
    # out = hidden @ W2 + b2
    o = jnp.dot(h, w2_ref[...], preferred_element_type=jnp.float32)
    o_ref[...] = (o + b2_ref[...]).astype(o_ref.dtype)


@functools.partial(jax.jit, static_argnames=("block_batch",))
def job_recommender_mlp(x, w1, b1, w2, b2, *, block_batch=2048):
    """Forward pass of JobRecommenderMLP via one batch-tiled Pallas kernel.

    x : (batch, input_dim) float32
    w1: (input_dim, hidden_dim), b1: (hidden_dim,) or (1, hidden_dim)
    w2: (hidden_dim, output_dim), b2: (output_dim,) or (1, output_dim)
    returns: (batch, output_dim) float32
    """
    batch, input_dim = x.shape
    hidden_dim = w1.shape[1]
    output_dim = w2.shape[1]
    b1 = b1.reshape(1, hidden_dim)
    b2 = b2.reshape(1, output_dim)

    # Batch tile: multiple of 8 sublanes (f32 min tile is (8,128)).
    tb = min(block_batch, _round_up(batch, 8))
    if batch > 16:
        # v7x megacore: keep >= 2 grid steps so both TensorCores get work.
        tb = min(tb, _round_up(_cdiv(batch, 2), 8))
    tb = max(8, _round_up(tb, 8))
    grid = (_cdiv(batch, tb),)   # partial last block handled by Pallas masking

    cost = pl.CostEstimate(
        flops=2 * batch * (input_dim * hidden_dim + hidden_dim * output_dim),
        transcendentals=0,
        bytes_accessed=4 * (batch * input_dim
                            + input_dim * hidden_dim + hidden_dim
                            + hidden_dim * output_dim + output_dim
                            + batch * output_dim),
    )

    # Double-buffered VMEM footprint: x/out tiles (x2 buffers each), resident
    # params (also x2), plus the f32 hidden activation.
    vmem_need = 4 * (2 * tb * (input_dim + output_dim)
                     + 2 * (input_dim * hidden_dim + hidden_dim
                            + hidden_dim * output_dim + output_dim)
                     + tb * hidden_dim)
    vmem_limit = None
    if vmem_need > (12 << 20):     # nearing v5e's 16 MiB scoped default
        vmem_limit = min(int(vmem_need * 2), 64 << 20)

    return pl.pallas_call(
        mlp_kernel,
        out_shape=jax.ShapeDtypeStruct((batch, output_dim), jnp.float32),
        grid_spec=pl.GridSpec(
            grid=grid,
            in_specs=[
                pl.BlockSpec((tb, input_dim), lambda i: (i, 0)),           # x (pipelined)
                pl.BlockSpec((input_dim, hidden_dim), lambda i: (0, 0)),   # W1 (VMEM-resident)
                pl.BlockSpec((1, hidden_dim), lambda i: (0, 0)),           # b1 (VMEM-resident)
                pl.BlockSpec((hidden_dim, output_dim), lambda i: (0, 0)),  # W2 (VMEM-resident)
                pl.BlockSpec((1, output_dim), lambda i: (0, 0)),           # b2 (VMEM-resident)
            ],
            out_specs=pl.BlockSpec((tb, output_dim), lambda i: (i, 0)),
        ),
        compiler_params=pltpu.CompilerParams(
            dimension_semantics=("parallel",),
            vmem_limit_bytes=vmem_limit,
        ),
        cost_estimate=cost,
    )(x, w1, b1, w2, b2)


def init_params(key, input_dim, hidden_dim, output_dim):
    """Deterministic PyTorch-style (uniform +-1/sqrt(fan_in)) init."""
    k1, k2, k3, k4 = jax.random.split(key, 4)
    bound1 = 1.0 / (input_dim ** 0.5)
    bound2 = 1.0 / (hidden_dim ** 0.5)
    w1 = jax.random.uniform(k1, (input_dim, hidden_dim), jnp.float32, -bound1, bound1)
    b1 = jax.random.uniform(k2, (1, hidden_dim), jnp.float32, -bound1, bound1)
    w2 = jax.random.uniform(k3, (hidden_dim, output_dim), jnp.float32, -bound2, bound2)
    b2 = jax.random.uniform(k4, (1, output_dim), jnp.float32, -bound2, bound2)
    return w1, b1, w2, b2


if __name__ == "__main__":
    # Small shapes consistent with the module:
    #   input_dim  ~ Big-Five-augmented feature vector -> 8
    #   hidden_dim = 128 (exactly as in the module spec)
    #   output_dim = number of jobs in the profile sheet -> 16
    # batch=30 exercises batch tiling (grid=(2,) via the v7x >=2-step cap) and
    # a masked partial final block (rows 30..31).
    batch, input_dim, hidden_dim, output_dim = 30, 8, 128, 16

    key = jax.random.PRNGKey(0)
    kx, kp = jax.random.split(key)
    x = jax.random.normal(kx, (batch, input_dim), jnp.float32)
    w1, b1, w2, b2 = init_params(kp, input_dim, hidden_dim, output_dim)

    out = job_recommender_mlp(x, w1, b1, w2, b2)
    out = jax.block_until_ready(out)
    assert out.shape == (batch, output_dim)

    # Full-precision reference (module semantics). Tolerance covers any
    # backend-default matmul-precision differences between XLA and Mosaic.
    hi = jax.lax.Precision.HIGHEST
    h_ref = jnp.maximum(jnp.dot(x, w1, precision=hi) + b1, 0.0)
    ref = jnp.dot(h_ref, w2, precision=hi) + b2
    assert jnp.allclose(out, ref, atol=2e-2, rtol=2e-2)

    print("KERNEL_OK")
</pallas_src>

<mosaic_0001>
module attributes {stable_mosaic.version = 11 : i64} {
  func.func @mlp_kernel(%arg0: i32, %arg1: memref<16x8xf32, #tpu.memory_space<vmem>>, %arg2: memref<8x128xf32, #tpu.memory_space<vmem>>, %arg3: memref<1x128xf32, #tpu.memory_space<vmem>>, %arg4: memref<128x16xf32, #tpu.memory_space<vmem>>, %arg5: memref<1x16xf32, #tpu.memory_space<vmem>>, %arg6: memref<16x16xf32, #tpu.memory_space<vmem>>) attributes {dimension_semantics = [#tpu.dimension_semantics<parallel>], iteration_bounds = array<i64: 2>, scalar_prefetch = 0 : i64, scratch_operands = 0 : i64, tpu.core_type = #tpu.core_type<tc>, window_params = [{transform_indices = @transform_0, window_bounds = array<i64: 16, 8>}, {pipeline_mode = #tpu.pipeline_mode<synchronous>, transform_indices = @transform_1, window_bounds = array<i64: 8, 128>}, {pipeline_mode = #tpu.pipeline_mode<synchronous>, transform_indices = @transform_2, window_bounds = array<i64: 1, 128>}, {pipeline_mode = #tpu.pipeline_mode<synchronous>, transform_indices = @transform_3, window_bounds = array<i64: 128, 16>}, {pipeline_mode = #tpu.pipeline_mode<synchronous>, transform_indices = @transform_4, window_bounds = array<i64: 1, 16>}, {transform_indices = @transform_5, window_bounds = array<i64: 16, 16>}]} {
    %c0 = arith.constant 0 : index
    %c0_0 = arith.constant 0 : index
    %0 = vector.load %arg1[%c0, %c0_0] : memref<16x8xf32, #tpu.memory_space<vmem>>, vector<16x8xf32>
    %c0_1 = arith.constant 0 : index
    %c0_2 = arith.constant 0 : index
    %1 = vector.load %arg2[%c0_1, %c0_2] : memref<8x128xf32, #tpu.memory_space<vmem>>, vector<8x128xf32>
    %cst = arith.constant dense<0.000000e+00> : vector<16x128xf32>
    %2 = tpu.matmul %0, %1, %cst {dimension_numbers = #tpu.dot_dimension_numbers<[1], [0], [0], [1], [0, 0, 1, 1], [], []>} : vector<16x8xf32>, vector<8x128xf32>, vector<16x128xf32> -> vector<16x128xf32>
    %c0_3 = arith.constant 0 : index
    %c0_4 = arith.constant 0 : index
    %3 = vector.load %arg3[%c0_3, %c0_4] : memref<1x128xf32, #tpu.memory_space<vmem>>, vector<1x128xf32>
    %4 = vector.broadcast %3 : vector<1x128xf32> to vector<16x128xf32>
    %5 = arith.addf %2, %4 : vector<16x128xf32>
    %cst_5 = arith.constant 0.000000e+00 : f32
    %6 = vector.broadcast %cst_5 : f32 to vector<16x128xf32>
    %7 = arith.maximumf %5, %6 : vector<16x128xf32>
    %c0_6 = arith.constant 0 : index
    %c0_7 = arith.constant 0 : index
    %8 = vector.load %arg4[%c0_6, %c0_7] : memref<128x16xf32, #tpu.memory_space<vmem>>, vector<128x16xf32>
    %cst_8 = arith.constant dense<0.000000e+00> : vector<16x16xf32>
    %9 = tpu.matmul %7, %8, %cst_8 {dimension_numbers = #tpu.dot_dimension_numbers<[1], [0], [0], [1], [0, 0, 1, 1], [], []>} : vector<16x128xf32>, vector<128x16xf32>, vector<16x16xf32> -> vector<16x16xf32>
    %c0_9 = arith.constant 0 : index
    %c0_10 = arith.constant 0 : index
    %10 = vector.load %arg5[%c0_9, %c0_10] : memref<1x16xf32, #tpu.memory_space<vmem>>, vector<1x16xf32>
    %11 = vector.broadcast %10 : vector<1x16xf32> to vector<16x16xf32>
    %12 = arith.addf %9, %11 : vector<16x16xf32>
    %c0_11 = arith.constant 0 : index
    %c0_12 = arith.constant 0 : index
    %13 = vector.load %arg6[%c0_11, %c0_12] : memref<16x16xf32, #tpu.memory_space<vmem>>, vector<16x16xf32>
    tpu.vector_store %arg6[%c0_11, %c0_12], %12 {strides = array<i32>} : memref<16x16xf32, #tpu.memory_space<vmem>>, vector<16x16xf32>,
    return
  }
  func.func @transform_0(%arg0: i32) -> (i32, i32) {
    %c0_i32 = arith.constant 0 : i32
    %c0_i32_0 = arith.constant 0 : i32
    return %arg0, %c0_i32 : i32, i32
  }
  func.func @transform_1(%arg0: i32) -> (i32, i32) {
    %c0_i32 = arith.constant 0 : i32
    %c0_i32_0 = arith.constant 0 : i32
    %c0_i32_1 = arith.constant 0 : i32
    return %c0_i32, %c0_i32_0 : i32, i32
  }
  func.func @transform_2(%arg0: i32) -> (i32, i32) {
    %c0_i32 = arith.constant 0 : i32
    %c0_i32_0 = arith.constant 0 : i32
    %c0_i32_1 = arith.constant 0 : i32
    return %c0_i32, %c0_i32_0 : i32, i32
  }
  func.func @transform_3(%arg0: i32) -> (i32, i32) {
    %c0_i32 = arith.constant 0 : i32
    %c0_i32_0 = arith.constant 0 : i32
    %c0_i32_1 = arith.constant 0 : i32
    return %c0_i32, %c0_i32_0 : i32, i32
  }
  func.func @transform_4(%arg0: i32) -> (i32, i32) {
    %c0_i32 = arith.constant 0 : i32
    %c0_i32_0 = arith.constant 0 : i32
    %c0_i32_1 = arith.constant 0 : i32
    return %c0_i32, %c0_i32_0 : i32, i32
  }
  func.func @transform_5(%arg0: i32) -> (i32, i32) {
    %c0_i32 = arith.constant 0 : i32
    %c0_i32_0 = arith.constant 0 : i32
    return %arg0, %c0_i32 : i32, i32
  }
}

</mosaic_0001>

<llo_original>
// kernel: job_recommender_mlp.1
$region0: #{job_recommender_mlp.1}
  #allocation0 [shape = 'u32[]', space=smem, size = 0x4, offset = 0x4, fixed_abs, tag = 'smem constant byte address 0x4 - core index']
  #allocation1 [shape = 'u32[144,128]{1,0:T(1,128)}', space=vmem, size = 0x12000, scoped, tag = 'internal scratch']
  %s0 = inlined_call_operand.vmem [shape: f32[30,8], index: 0, kind: input, shape index: {}]
  %s1 = inlined_call_operand.vmem [shape: f32[8,128], index: 1, kind: input, shape index: {}]
  %s2 = inlined_call_operand.vmem [shape: f32[1,128], index: 2, kind: input, shape index: {}]
  %s3 = inlined_call_operand.vmem [shape: f32[128,16], index: 3, kind: input, shape index: {}]
  %s4 = inlined_call_operand.vmem [shape: f32[1,16], index: 4, kind: input, shape index: {}]
  %s5 = inlined_call_operand.vmem [shape: f32[30,16], index: 5, kind: output, shape index: {}]
  %s6 = sld [smem:[#allocation0]]
  $region53: #{job_recommender_mlp.1} parent=0
    _
  %s8 = ssub.s32 1, %s6
  %s9 = scalar_select 0, %s8, %s6
  loop: start=0, step=1, limit=4
  $region2: #{job_recommender_mlp.1} parent=0 // loop_pre_header
    _
  $region3: #{job_recommender_mlp.1} parent=0 // loop_header
    %s11 = sphi 0, %s15
    %p12 = scmp.ge.s32.totalorder %s11, 4
    %s21 = sphi 0, %s23
    %s24 = sphi 0, %s21
    %s25 = sphi 0, %s24
    %s41 = sphi 0, %s25
    %s45 = sphi 0, %s45
    %s47 = sphi 0, %s45
    %s48 = sphi 0, %s47
    %s62 = sphi 0, %s48
    %s66 = sphi 0, %s66
    %s68 = sphi 0, %s66
    %s69 = sphi 0, %s68
    %s83 = sphi 0, %s69
    %s87 = sphi 0, %s87
    %s89 = sphi 0, %s87
    %s90 = sphi 0, %s89
    %s104 = sphi 0, %s90
    %s108 = sphi 0, %s108
    %s110 = sphi 0, %s108
    %s111 = sphi 0, %s110
    %s125 = sphi 0, %s111
    %s131 = sphi 0, %s133
    %s134 = sphi 0, %s131
    %s135 = sphi 0, %s134
    %s151 = sphi 0, %s135
  $region4: #{job_recommender_mlp.1} parent=0 // loop_header_branch
    %14 = sbr.rel (%p12) target = $region8
  $region5: #{job_recommender_mlp.1} parent=0 // loop_body
    %s16 = ssub.s32 %s11, 1
    %s17 = ssub.s32 %s11, 2
    %s18 = sadd.s32 %s11, 1
    %s19 = ssub.s32 %s11, %s18
    %p20 = scmp.eq.s32.totalorder %s19, 0
    %s22 = sadd.s32 %s21, 1
    %s23 = scalar_select %p20, %s21, %s22
    %p26 = pneg %p20
    %p27 = scmp.eq.s32.totalorder %s11, 1
    %p28 = por %p26, %p27
    %p29 = scmp.ne.s32.totalorder %s21, %s24
    %p30 = scmp.eq.s32.totalorder %s11, 0
    %p31 = por %p29, %p30
    %p32 = scmp.ne.s32.totalorder %s21, %s24
    %p33 = scmp.eq.s32.totalorder %s16, 1
    %p34 = por %p32, %p33
    %p35 = scmp.ne.s32.totalorder %s24, %s25
    %p36 = scmp.eq.s32.totalorder %s16, 0
    %p37 = por %p35, %p36
    %p38 = scmp.ne.s32.totalorder %s24, %s25
    %p39 = scmp.eq.s32.totalorder %s17, 1
    %p40 = por %p38, %p39
    %p42 = scmp.ne.s32.totalorder %s25, %s41
    %p43 = scmp.eq.s32.totalorder %s17, 0
    %p44 = por %p42, %p43
    %s46 = sadd.s32 %s45, 1
    %p49 = scmp.eq.s32.totalorder %s11, 1
    %p50 = scmp.ne.s32.totalorder %s45, %s47
    %p51 = scmp.eq.s32.totalorder %s11, 0
    %p52 = por %p50, %p51
    %p53 = scmp.ne.s32.totalorder %s45, %s47
    %p54 = scmp.eq.s32.totalorder %s16, 1
    %p55 = por %p53, %p54
    %p56 = scmp.ne.s32.totalorder %s47, %s48
    %p57 = scmp.eq.s32.totalorder %s16, 0
    %p58 = por %p56, %p57
    %p59 = scmp.ne.s32.totalorder %s47, %s48
    %p60 = scmp.eq.s32.totalorder %s17, 1
    %p61 = por %p59, %p60
    %p63 = scmp.ne.s32.totalorder %s48, %s62
    %p64 = scmp.eq.s32.totalorder %s17, 0
    %p65 = por %p63, %p64
    %s67 = sadd.s32 %s66, 1
    %p70 = scmp.eq.s32.totalorder %s11, 1
    %p71 = scmp.ne.s32.totalorder %s66, %s68
    %p72 = scmp.eq.s32.totalorder %s11, 0
    %p73 = por %p71, %p72
    %p74 = scmp.ne.s32.totalorder %s66, %s68
    %p75 = scmp.eq.s32.totalorder %s16, 1
    %p76 = por %p74, %p75
    %p77 = scmp.ne.s32.totalorder %s68, %s69
    %p78 = scmp.eq.s32.totalorder %s16, 0
    %p79 = por %p77, %p78
    %p80 = scmp.ne.s32.totalorder %s68, %s69
    %p81 = scmp.eq.s32.totalorder %s17, 1
    %p82 = por %p80, %p81
    %p84 = scmp.ne.s32.totalorder %s69, %s83
    %p85 = scmp.eq.s32.totalorder %s17, 0
    %p86 = por %p84, %p85
    %s88 = sadd.s32 %s87, 1
    %p91 = scmp.eq.s32.totalorder %s11, 1
    %p92 = scmp.ne.s32.totalorder %s87, %s89
    %p93 = scmp.eq.s32.totalorder %s11, 0
    %p94 = por %p92, %p93
    %p95 = scmp.ne.s32.totalorder %s87, %s89
    %p96 = scmp.eq.s32.totalorder %s16, 1
    %p97 = por %p95, %p96
    %p98 = scmp.ne.s32.totalorder %s89, %s90
    %p99 = scmp.eq.s32.totalorder %s16, 0
    %p100 = por %p98, %p99
    %p101 = scmp.ne.s32.totalorder %s89, %s90
    %p102 = scmp.eq.s32.totalorder %s17, 1
    %p103 = por %p101, %p102
    %p105 = scmp.ne.s32.totalorder %s90, %s104
    %p106 = scmp.eq.s32.totalorder %s17, 0
    %p107 = por %p105, %p106
    %s109 = sadd.s32 %s108, 1
    %p112 = scmp.eq.s32.totalorder %s11, 1
    %p113 = scmp.ne.s32.totalorder %s108, %s110
    %p114 = scmp.eq.s32.totalorder %s11, 0
    %p115 = por %p113, %p114
    %p116 = scmp.ne.s32.totalorder %s108, %s110
    %p117 = scmp.eq.s32.totalorder %s16, 1
    %p118 = por %p116, %p117
    %p119 = scmp.ne.s32.totalorder %s110, %s111
    %p120 = scmp.eq.s32.totalorder %s16, 0
    %p121 = por %p119, %p120
    %p122 = scmp.ne.s32.totalorder %s110, %s111
    %p123 = scmp.eq.s32.totalorder %s17, 1
    %p124 = por %p122, %p123
    %p126 = scmp.ne.s32.totalorder %s111, %s125
    %p127 = scmp.eq.s32.totalorder %s17, 0
    %p128 = por %p126, %p127
    %s129 = ssub.s32 %s11, %s18
    %p130 = scmp.eq.s32.totalorder %s129, 0
    %s132 = sadd.s32 %s131, 1
    %s133 = scalar_select %p130, %s131, %s132
    %p136 = pneg %p130
    %p137 = scmp.eq.s32.totalorder %s11, 1
    %p138 = por %p136, %p137
    %p139 = scmp.ne.s32.totalorder %s131, %s134
    %p140 = scmp.eq.s32.totalorder %s11, 0
    %p141 = por %p139, %p140
    %p142 = scmp.ne.s32.totalorder %s131, %s134
    %p143 = scmp.eq.s32.totalorder %s16, 1
    %p144 = por %p142, %p143
    %p145 = scmp.ne.s32.totalorder %s134, %s135
    %p146 = scmp.eq.s32.totalorder %s16, 0
    %p147 = por %p145, %p146
    %p148 = scmp.ne.s32.totalorder %s134, %s135
    %p149 = scmp.eq.s32.totalorder %s17, 1
    %p150 = por %p148, %p149
    %p152 = scmp.ne.s32.totalorder %s135, %s151
    %p153 = scmp.eq.s32.totalorder %s17, 0
    %p154 = por %p152, %p153
    %p155 = scmp.le.s32.totalorder 1, %s11
    %p156 = scmp.lt.s32.totalorder %s11, 3
    %p157 = pnand %p155, %p156
    %p158 = pneg %p157
    // Predicated region
    $region9: #{job_recommender_mlp.1} parent=5 // pred_check
      _
    $region10: #{job_recommender_mlp.1} parent=5 // pred_check_branch
      %160 = sbr.rel (%p157) target = $region12
    $region11: #{job_recommender_mlp.1} parent=5 // pred_region
      %s161 = ssub.s32 %s11, 1
      // Predicated region
      $region13: #{job_recommender_mlp.1} parent=11 // pred_check
        %p162 = pneg %p58
      $region14: #{job_recommender_mlp.1} parent=11 // pred_check_branch
        %164 = sbr.rel (%p162) target = $region16
      $region15: #{job_recommender_mlp.1} parent=11 // pred_region
        _
      $region16: #{job_recommender_mlp.1} parent=11 // pred_fallthru
        _
      // Predicated region
      $region17: #{job_recommender_mlp.1} parent=11 // pred_check
        %p165 = pneg %p79
      $region18: #{job_recommender_mlp.1} parent=11 // pred_check_branch
        %167 = sbr.rel (%p165) target = $region20
      $region19: #{job_recommender_mlp.1} parent=11 // pred_region
        _
      $region20: #{job_recommender_mlp.1} parent=11 // pred_fallthru
        _
      // Predicated region
      $region21: #{job_recommender_mlp.1} parent=11 // pred_check
        %p168 = pneg %p100
      $region22: #{job_recommender_mlp.1} parent=11 // pred_check_branch
        %170 = sbr.rel (%p168) target = $region24
      $region23: #{job_recommender_mlp.1} parent=11 // pred_region
        _
      $region24: #{job_recommender_mlp.1} parent=11 // pred_fallthru
        _
      // Predicated region
      $region25: #{job_recommender_mlp.1} parent=11 // pred_check
        %p171 = pneg %p121
      $region26: #{job_recommender_mlp.1} parent=11 // pred_check_branch
        %173 = sbr.rel (%p171) target = $region28
      $region27: #{job_recommender_mlp.1} parent=11 // pred_region
        _
      $region28: #{job_recommender_mlp.1} parent=11 // pred_fallthru
        _
    $region12: #{job_recommender_mlp.1} parent=5 // pred_fallthru
      _
    %p174 = scmp.lt.s32.totalorder %s11, 2
    // Predicated region
    $region29: #{job_recommender_mlp.1} parent=5 // pred_check
      %p175 = pneg %p174
    $region30: #{job_recommender_mlp.1} parent=5 // pred_check_branch
      %177 = sbr.rel (%p175) target = $region32
    $region31: #{job_recommender_mlp.1} parent=5 // pred_region
      // Predicated region
      $region33: #{job_recommender_mlp.1} parent=31 // pred_check
        %p178 = pneg %p31
      $region34: #{job_recommender_mlp.1} parent=31 // pred_check_branch
        %180 = sbr.rel (%p178) target = $region36
      $region35: #{job_recommender_mlp.1} parent=31 // pred_region
        %s181 = smul.u32 2, %s11
        %p182 = scmp.lt.s32.totalorder %s181, 3
        %s183 = scalar_select %p182, %s181, 3
        %s184 = smul.addr %s183, 8
        %s185 = scalar_lea.vmem %s0, %s184
        %s186 = smul.u32 2, %s11
      $region36: #{job_recommender_mlp.1} parent=31 // pred_fallthru
        _
    $region32: #{job_recommender_mlp.1} parent=5 // pred_fallthru
      _
    %p187 = scmp.le.s32.totalorder 1, %s11
    %p188 = scmp.lt.s32.totalorder %s11, 3
    %p189 = pnand %p187, %p188
    %p190 = pneg %p189
    // Predicated region
    $region37: #{job_recommender_mlp.1} parent=5 // pred_check
      _
    $region38: #{job_recommender_mlp.1} parent=5 // pred_check_branch
      %192 = sbr.rel (%p189) target = $region40
    $region39: #{job_recommender_mlp.1} parent=5 // pred_region
      %s193 = ssub.s32 %s11, 1
      %s194 = smul.u32 2, %s16
      %p195 = scmp.lt.s32.totalorder %s194, 3
      %s196 = scalar_select %p195, %s194, 3
      %s197 = smul.addr %s196, 8
      %s198 = scalar_lea.vmem %s0, %s197
      %p199 = pneg %p37
      %p200 = pneg %p34
      %p201 = pneg %p58
      %p202 = pneg %p55
      %p203 = pneg %p79
      %p204 = pneg %p76
      %p205 = pneg %p100
      %p206 = pneg %p97
      %p207 = pneg %p121
      %p208 = pneg %p118
      %p209 = pneg %p147
      %p210 = pneg %p144
      %s211 = smul.u32 2, %s16
      %p212 = scmp.lt.s32.totalorder %s211, 3
      %s213 = scalar_select %p212, %s211, 3
      %s214 = smul.addr %s213, 8
      %s215 = scalar_lea.vmem %s5, %s214
      %s216 = smul.u32 2, %s16
      %p217 = scmp.lt.s32.totalorder %s216, 3
      %s218 = scalar_select %p217, %s216, 3
      %s219 = smul.addr %s218, 8
      %s220 = scalar_lea.vmem %s0, %s219
      %s221 = smul.u32 2, %s16
      %s222 = smul.u32 2, %s16
      %p223 = scmp.lt.s32.totalorder %s222, 3
      %s224 = scalar_select %p223, %s222, 3
      %s225 = smul.addr %s224, 8
      %s226 = scalar_lea.vmem %s5, %s225
      %s227 = smul.u32 2, %s16
      %v228 = vld [vmem:[%s220] sm:$0xff]
      %v229 = vld [vmem:[%s220 + $0x8] sm:$0xff]
      %v230 = vld [vmem:[%s1] sm:$0xff]
      %v231 = vld [vmem:[%s2] sm:$0x1]
      %v233 = vlaneseq
      %v234 = vshrl.u32 %v233, 7
      %v235 = vsub.s32 0, %v234
      %v236 = vrot.slane %v231, %v235
      %vm238 = vcmask 64512
      %v240 = vsel %vm238, %v228, 0
      %v243 = vsel %vm238, %v229, 0
      %245 = vmatprep.subr.mxu0 0.0
      %246 = vmatpush1.msra.mxu0 0.0
      %247 = vmatprep.subr.mxu0 0.0
      %248 = vmatpush1.msra.mxu0 0.0
      %249 = vmatprep.subr.mxu0 0.0
      %250 = vmatpush1.msra.mxu0 0.0
      %251 = vmatprep.subr.mxu0 0.0
      %252 = vmatpush1.msra.mxu0 0.0
      %253 = vmatprep.subr.mxu0 0.0
      %254 = vmatpush1.msra.mxu0 0.0
      %255 = vmatprep.subr.mxu0 0.0
      %256 = vmatpush1.msra.mxu0 0.0
      %257 = vmatprep.subr.mxu0 0.0
      %258 = vmatpush1.msra.mxu0 0.0
      %259 = vmatprep.subr.mxu0 0.0
      %260 = vmatpush1.msra.mxu0 0.0
      %261 = vmatprep.subr.mxu0 0.0
      %262 = vmatpush1.msra.mxu0 0.0
      %263 = vmatprep.subr.mxu0 0.0
      %264 = vmatpush1.msra.mxu0 0.0
      %265 = vmatprep.subr.mxu0 0.0
      %266 = vmatpush1.msra.mxu0 0.0
      %267 = vmatprep.subr.mxu0 0.0
      %268 = vmatpush1.msra.mxu0 0.0
      %269 = vmatprep.subr.mxu0 0.0
      %270 = vmatpush1.msra.mxu0 0.0
      %271 = vmatprep.subr.mxu0 0.0
      %272 = vmatpush1.msra.mxu0 0.0
      %273 = vmatprep.subr.mxu0 0.0
      %274 = vmatpush1.msra.mxu0 0.0
      %275 = vmatprep.subr.mxu0 0.0
      %276 = vmatpush1.msra.mxu0 %v230
      %277 = vmatprep.subr.mxu0 0.0
      %278 = vmatpush2.msra.mxu0 0.0
      %279 = vmatprep.subr.mxu0 0.0
      %280 = vmatpush2.msra.mxu0 0.0
      %281 = vmatprep.subr.mxu0 0.0
      %282 = vmatpush2.msra.mxu0 0.0
      %283 = vmatprep.subr.mxu0 0.0
      %284 = vmatpush2.msra.mxu0 0.0
      %285 = vmatprep.subr.mxu0 0.0
      %286 = vmatpush2.msra.mxu0 0.0
      %287 = vmatprep.subr.mxu0 0.0
      %288 = vmatpush2.msra.mxu0 0.0
      %289 = vmatprep.subr.mxu0 0.0
      %290 = vmatpush2.msra.mxu0 0.0
      %291 = vmatprep.subr.mxu0 0.0
      %292 = vmatpush2.msra.mxu0 0.0
      %293 = vmatprep.subr.mxu0 0.0
      %294 = vmatpush2.msra.mxu0 0.0
      %295 = vmatprep.subr.mxu0 0.0
      %296 = vmatpush2.msra.mxu0 0.0
      %297 = vmatprep.subr.mxu0 0.0
      %298 = vmatpush2.msra.mxu0 0.0
      %299 = vmatprep.subr.mxu0 0.0
      %300 = vmatpush2.msra.mxu0 0.0
      %301 = vmatprep.subr.mxu0 0.0
      %302 = vmatpush2.msra.mxu0 0.0
      %303 = vmatprep.subr.mxu0 0.0
      %304 = vmatpush2.msra.mxu0 0.0
      %305 = vmatprep.subr.mxu0 0.0
      %306 = vmatpush2.msra.mxu0 0.0
      %307 = vmatprep.subr.mxu0 0.0
      %308 = vmatpush2.msra.mxu0 0.0
      %309 = vmatprep.mubr.f32.mxu0 0.0
      %310 = vmatmul.mubr.f32.gmra.mxu0 %v240
      %v311 = vpop.f32.mrf.mxu0
      %v312 = vadd.f32 %v236, %v311
      %v313 = vpop.f32.mrf.mxu0
      %314 = vmatprep.mubr.f32.mxu0 0.0
      %315 = vmatmul.mubr.f32.gmra.mxu0 %v243
      %v316 = vpop.f32.mrf.mxu0
      %v317 = vadd.f32 %v236, %v316
      %v318 = vpop.f32.mrf.mxu0
      %319 = vdwg.mxu0
      %v320 = vmax.f32 %v312, 0.0
      %v321 = vmax.f32 %v317, 0.0
      %v322 = vld [vmem:[%s3] sm:$0xff]
      %v323 = vld [vmem:[%s3 + $0x8] sm:$0xff]
      %v324 = vld [vmem:[%s3 + $0x10] sm:$0xff]
      %v325 = vld [vmem:[%s3 + $0x18] sm:$0xff]
      %v326 = vld [vmem:[%s3 + $0x20] sm:$0xff]
      %v327 = vld [vmem:[%s3 + $0x28] sm:$0xff]
      %v328 = vld [vmem:[%s3 + $0x30] sm:$0xff]
      %v329 = vld [vmem:[%s3 + $0x38] sm:$0xff]
      %v330 = vld [vmem:[%s3 + $0x40] sm:$0xff]
      %v331 = vld [vmem:[%s3 + $0x48] sm:$0xff]
      %v332 = vld [vmem:[%s3 + $0x50] sm:$0xff]
      %v333 = vld [vmem:[%s3 + $0x58] sm:$0xff]
      %v334 = vld [vmem:[%s3 + $0x60] sm:$0xff]
      %v335 = vld [vmem:[%s3 + $0x68] sm:$0xff]
      %v336 = vld [vmem:[%s3 + $0x70] sm:$0xff]
      %v337 = vld [vmem:[%s3 + $0x78] sm:$0xff]
      %v338 = vld [vmem:[%s4] sm:$0x1]
      %v340 = vlaneseq
      %v341 = vshrl.u32 %v340, 7
      %v342 = vsub.s32 0, %v341
      %v343 = vrot.slane %v338, %v342
      %345 = vmatprep.subr.mxu0 0.0
      %346 = vmatpush1.msra.mxu0 %v337
      %347 = vmatprep.subr.mxu0 0.0
      %348 = vmatpush1.msra.mxu0 %v336
      %349 = vmatprep.subr.mxu0 0.0
      %350 = vmatpush1.msra.mxu0 %v335
      %351 = vmatprep.subr.mxu0 0.0
      %352 = vmatpush1.msra.mxu0 %v334
      %353 = vmatprep.subr.mxu0 0.0
      %354 = vmatpush1.msra.mxu0 %v333
      %355 = vmatprep.subr.mxu0 0.0
      %356 = vmatpush1.msra.mxu0 %v332
      %357 = vmatprep.subr.mxu0 0.0
      %358 = vmatpush1.msra.mxu0 %v331
      %359 = vmatprep.subr.mxu0 0.0
      %360 = vmatpush1.msra.mxu0 %v330
      %361 = vmatprep.subr.mxu0 0.0
      %362 = vmatpush1.msra.mxu0 %v329
      %363 = vmatprep.subr.mxu0 0.0
      %364 = vmatpush1.msra.mxu0 %v328
      %365 = vmatprep.subr.mxu0 0.0
      %366 = vmatpush1.msra.mxu0 %v327
      %367 = vmatprep.subr.mxu0 0.0
      %368 = vmatpush1.msra.mxu0 %v326
      %369 = vmatprep.subr.mxu0 0.0
      %370 = vmatpush1.msra.mxu0 %v325
      %371 = vmatprep.subr.mxu0 0.0
      %372 = vmatpush1.msra.mxu0 %v324
      %373 = vmatprep.subr.mxu0 0.0
      %374 = vmatpush1.msra.mxu0 %v323
      %375 = vmatprep.subr.mxu0 0.0
      %376 = vmatpush1.msra.mxu0 %v322
      %377 = vmatprep.subr.mxu0 0.0
      %378 = vmatpush2.msra.mxu0 0.0
      %379 = vmatprep.subr.mxu0 0.0
      %380 = vmatpush2.msra.mxu0 0.0
      %381 = vmatprep.subr.mxu0 0.0
      %382 = vmatpush2.msra.mxu0 0.0
      %383 = vmatprep.subr.mxu0 0.0
      %384 = vmatpush2.msra.mxu0 0.0
      %385 = vmatprep.subr.mxu0 0.0
      %386 = vmatpush2.msra.mxu0 0.0
      %387 = vmatprep.subr.mxu0 0.0
      %388 = vmatpush2.msra.mxu0 0.0
      %389 = vmatprep.subr.mxu0 0.0
      %390 = vmatpush2.msra.mxu0 0.0
      %391 = vmatprep.subr.mxu0 0.0
      %392 = vmatpush2.msra.mxu0 0.0
      %393 = vmatprep.subr.mxu0 0.0
      %394 = vmatpush2.msra.mxu0 0.0
      %395 = vmatprep.subr.mxu0 0.0
      %396 = vmatpush2.msra.mxu0 0.0
      %397 = vmatprep.subr.mxu0 0.0
      %398 = vmatpush2.msra.mxu0 0.0
      %399 = vmatprep.subr.mxu0 0.0
      %400 = vmatpush2.msra.mxu0 0.0
      %401 = vmatprep.subr.mxu0 0.0
      %402 = vmatpush2.msra.mxu0 0.0
      %403 = vmatprep.subr.mxu0 0.0
      %404 = vmatpush2.msra.mxu0 0.0
      %405 = vmatprep.subr.mxu0 0.0
      %406 = vmatpush2.msra.mxu0 0.0
      %407 = vmatprep.subr.mxu0 0.0
      %408 = vmatpush2.msra.mxu0 0.0
      %409 = vmatprep.mubr.f32.mxu0 0.0
      %410 = vmatmul.mubr.f32.gmra.mxu0 %v320
      %v411 = vpop.f32.mrf.mxu0
      %v412 = vadd.f32 %v343, %v411
      %v413 = vpop.f32.mrf.mxu0
      %414 = vmatprep.mubr.f32.mxu0 0.0
      %415 = vmatmul.mubr.f32.gmra.mxu0 %v321
      %v416 = vpop.f32.mrf.mxu0
      %v417 = vadd.f32 %v343, %v416
      %v418 = vpop.f32.mrf.mxu0
      %419 = vdwg.mxu0
      %vm420 = vcmask 130048
      %421 = vst.msk [vmem:[%s226] sm:$0xff] %vm420, %v412
      %422 = vst.msk [vmem:[%s226 + $0x8] sm:$0xff] %vm420, %v417
      %s423 = smul.u32 2, %s16
      %p424 = scmp.lt.s32.totalorder %s423, 3
      %s425 = scalar_select %p424, %s423, 3
      %s426 = smul.addr %s425, 8
      %s427 = scalar_lea.vmem %s5, %s426
      // Predicated region
      $region41: #{job_recommender_mlp.1} parent=39 // pred_check
        %p428 = pneg %p144
      $region42: #{job_recommender_mlp.1} parent=39 // pred_check_branch
        %430 = sbr.rel (%p428) target = $region44
      $region43: #{job_recommender_mlp.1} parent=39 // pred_region
        %s431 = smul.u32 2, %s16
      $region44: #{job_recommender_mlp.1} parent=39 // pred_fallthru
        _
    $region40: #{job_recommender_mlp.1} parent=5 // pred_fallthru
      _
    %p432 = scmp.le.s32.totalorder 2, %s11
    // Predicated region
    $region45: #{job_recommender_mlp.1} parent=5 // pred_check
      %p433 = pneg %p432
    $region46: #{job_recommender_mlp.1} parent=5 // pred_check_branch
      %435 = sbr.rel (%p433) target = $region48
    $region47: #{job_recommender_mlp.1} parent=5 // pred_region
      %s436 = ssub.s32 %s11, 2
      // Predicated region
      $region49: #{job_recommender_mlp.1} parent=47 // pred_check
        %p437 = pneg %p150
      $region50: #{job_recommender_mlp.1} parent=47 // pred_check_branch
        %439 = sbr.rel (%p437) target = $region52
      $region51: #{job_recommender_mlp.1} parent=47 // pred_region
        %s440 = smul.u32 2, %s17
        %p441 = scmp.lt.s32.totalorder %s440, 3
        %s442 = scalar_select %p441, %s440, 3
        %s443 = smul.addr %s442, 8
        %s444 = scalar_lea.vmem %s5, %s443
      $region52: #{job_recommender_mlp.1} parent=47 // pred_fallthru
        _
    $region48: #{job_recommender_mlp.1} parent=5 // pred_fallthru
      _
  $region6: #{job_recommender_mlp.1} parent=0 // loop_footer
    %s15 = sadd.s32 1, %s11
  $region7: #{job_recommender_mlp.1} parent=0 // loop_footer_branch
    %10 = sbr.rel target = $region3
  $region8: #{job_recommender_mlp.1} parent=0 // loop_exit
    _

</llo_original>
